<compile_context>
chip_gen: v6e
topology: v6e:2x2x1
jax: 0.10.0
libtpu: 0.0.40
codegen_flags: <defaults>
</compile_context>

<pallas_src>
import functools

import jax
import jax.numpy as jnp
from jax.experimental import pallas as pl
from jax.experimental.pallas import tpu as pltpu


def _round_up(x, m):
    return (x + m - 1) // m * m


# ----------------------------------------------------------------------------
# Glue: QueryAndGroupPyramid (ball query with per-query radius + gather).
# TODO(synk): the ball-query neighbour search is a data-dependent gather with
# no clean Pallas equivalent; it is done in plain JAX (O(M*N) distance matrix).
# ----------------------------------------------------------------------------
def query_and_group_pyramid(xyz, xyz_batch_cnt, new_xyz, new_xyz_r,
                            new_xyz_batch_cnt, features, nsample,
                            use_xyz=True):
    """Returns grouped features, channel-last: (M, nsample, 3 + C)."""
    N = xyz.shape[0]
    M = new_xyz.shape[0]

    pt_cum = jnp.cumsum(xyz_batch_cnt)
    q_cum = jnp.cumsum(new_xyz_batch_cnt)
    pt_batch = jnp.searchsorted(pt_cum, jnp.arange(N), side="right")
    q_batch = jnp.searchsorted(q_cum, jnp.arange(M), side="right")

    diff = new_xyz[:, None, :] - xyz[None, :, :]            # (M, N, 3)
    dist2 = jnp.sum(diff * diff, axis=-1)                   # (M, N)
    r2 = (new_xyz_r[:, 0] ** 2)[:, None]                    # (M, 1)
    valid = (dist2 < r2) & (q_batch[:, None] == pt_batch[None, :])

    # top_k instead of a full row argsort: valid neighbours first, smallest
    # original index first (matches the CUDA ball query, which keeps the first
    # nsample hits and pads short lists with the first hit).
    arange = jnp.arange(N, dtype=jnp.int32)
    score = jnp.where(valid, 2 * N - arange, -1 - arange)
    _, idx = jax.lax.top_k(score, nsample)                  # (M, nsample)
    cnt = jnp.sum(valid, axis=-1)                           # (M,)
    slot_ok = jnp.arange(nsample)[None, :] < cnt[:, None]
    idx = jnp.where(slot_ok, idx, idx[:, :1])
    empty = cnt == 0

    grouped_xyz = xyz[idx] - new_xyz[:, None, :]            # (M, nsample, 3)
    grouped_feat = features[idx]                            # (M, nsample, C)
    if use_xyz:
        grouped = jnp.concatenate([grouped_xyz, grouped_feat], axis=-1)
    else:
        grouped = grouped_feat
    grouped = jnp.where(empty[:, None, None], 0.0, grouped)
    return grouped


# ----------------------------------------------------------------------------
# Pallas kernel: shared MLP (1x1 conv, BN folded, ReLU)* + max over nsample.
# ----------------------------------------------------------------------------
def _choose_tm(M, ns, target_rows=4096):
    """Row tile over the query dimension.

    tm*ns rows per block targets ~4K (2K-8K sweet spot); tm is a multiple of
    16 (clean bf16 sublane packing); keep >= 2 grid steps when M allows so the
    "parallel" axis shards across v7x's two TensorCores.
    """
    tm = max(16, (target_rows // max(ns, 1)) // 16 * 16)
    m16 = _round_up(M, 16)
    if tm >= m16 and m16 >= 32:
        tm = max(16, (m16 // 2) // 16 * 16)
    return min(tm, m16)


def _mlp_pool_kernel(x_ref, *refs, num_layers, ns, tm, cp, c_in_pad):
    out_ref = refs[-1]
    sh_ref = refs[-2]
    # (ns, tm, c_in) -> (ns*tm, c_in): pure leading-dim merge (tm % 16 == 0).
    h = x_ref[...].reshape(ns * tm, c_in_pad)                # bf16
    acc = None
    for k in range(num_layers):
        w = refs[k][...]                                     # bf16 (c_k, cp)
        acc = jnp.dot(h, w, preferred_element_type=jnp.float32)
        acc = jnp.maximum(acc + sh_ref[k], 0.0)              # folded BN + ReLU
        if k + 1 < num_layers:
            h = acc.astype(jnp.bfloat16)
    # Max-pool over the nsample axis: rows are sample-major, so this is
    # ns-1 VPU maxes over aligned, contiguous (tm, cp) slabs.
    pooled = acc[0:tm, :]
    for s in range(1, ns):
        pooled = jnp.maximum(pooled, acc[s * tm:(s + 1) * tm, :])
    out_ref[...] = pooled


def mlp_pool_level(grouped, weights, shifts, c_out):
    """grouped: (M, nsample, c_raw) f32 -> pooled features (M, c_out) f32."""
    M, ns, c_raw = grouped.shape
    num_layers = len(weights)
    c_in_pad = weights[0].shape[0]
    cp = weights[-1].shape[1]                                # lane-dense width
    tm = _choose_tm(M, ns)
    m_pad = _round_up(M, tm)

    # Sample-major, channel-padded, bf16 (halves the big HBM->VMEM DMA).
    x = jnp.transpose(grouped, (1, 0, 2))                    # (ns, M, c_raw)
    x = jnp.pad(x, ((0, 0), (0, m_pad - M), (0, c_in_pad - c_raw)))
    x = x.astype(jnp.bfloat16)

    kernel = functools.partial(_mlp_pool_kernel, num_layers=num_layers,
                               ns=ns, tm=tm, cp=cp, c_in_pad=c_in_pad)

    in_specs = [pl.BlockSpec((ns, tm, c_in_pad), lambda i: (0, i, 0))]
    for w in weights:                                        # resident weights
        in_specs.append(pl.BlockSpec(w.shape, lambda i: (0, 0)))
    in_specs.append(pl.BlockSpec(shifts.shape, lambda i: (0, 0, 0)))

    flops = 2 * m_pad * ns * sum(w.shape[0] * w.shape[1] for w in weights)
    bytes_accessed = (x.size * 2 + sum(w.size * 2 for w in weights)
                      + shifts.size * 4 + m_pad * cp * 4)

    out = pl.pallas_call(
        kernel,
        out_shape=jax.ShapeDtypeStruct((m_pad, cp), jnp.float32),
        grid=(m_pad // tm,),
        in_specs=in_specs,
        out_specs=pl.BlockSpec((tm, cp), lambda i: (i, 0)),
        compiler_params=pltpu.CompilerParams(
            dimension_semantics=("parallel",),
            # ~6-8 MiB actually needed per step; cap well under v7x's 64 MiB.
            vmem_limit_bytes=32 * 1024 * 1024),
        cost_estimate=pl.CostEstimate(flops=flops, transcendentals=0,
                                      bytes_accessed=bytes_accessed),
    )(x, *weights, shifts)
    return out[:M, :c_out]


# ----------------------------------------------------------------------------
# Parameter init: Conv2d(1x1, bias=False) kaiming_normal_ + BatchNorm2d in
# eval mode (running_mean=0, running_var=1) folded into the weight (scale) and
# a per-layer shift.  Weights are padded lane-dense and cast to bf16.
# TODO(synk): training-mode BatchNorm batch statistics are not reproduced.
# ----------------------------------------------------------------------------
def init_params(key, mlps, use_xyz=True, bn_eps=1e-5):
    params = []
    for mlp_spec in mlps:
        spec = list(mlp_spec)
        if use_xyz:
            spec[0] += 3
        num_layers = len(spec) - 1
        c_in_pad = _round_up(spec[0], 8)
        cp = max(_round_up(c, 128) for c in spec[1:])        # lane-dense width
        weights = []
        shifts = jnp.zeros((num_layers, 1, cp), jnp.float32)
        for k in range(num_layers):
            key, sub = jax.random.split(key)
            c_in, c_out = spec[k], spec[k + 1]
            std = (2.0 / c_in) ** 0.5                        # kaiming_normal_
            w = jax.random.normal(sub, (c_in, c_out), jnp.float32) * std
            gamma = jnp.ones((c_out,), jnp.float32)
            beta = jnp.zeros((c_out,), jnp.float32)
            mean = jnp.zeros((c_out,), jnp.float32)
            var = jnp.ones((c_out,), jnp.float32)
            scale = gamma / jnp.sqrt(var + bn_eps)
            shift = beta - mean * scale
            w = w * scale[None, :]                           # fold BN scale
            p_in = c_in_pad if k == 0 else cp
            w_pad = jnp.zeros((p_in, cp), jnp.float32)
            w_pad = w_pad.at[:c_in, :c_out].set(w)
            weights.append(w_pad.astype(jnp.bfloat16))
            shifts = shifts.at[k, 0, :c_out].set(shift)
        params.append({"weights": weights, "shifts": shifts,
                       "c_out": spec[-1]})
    return params


# ----------------------------------------------------------------------------
# Full StackSAModulePyramid forward.
# ----------------------------------------------------------------------------
def stack_sa_module_pyramid_forward(xyz, xyz_batch_cnt, new_xyz_list,
                                    new_xyz_r_list, new_xyz_batch_cnt_list,
                                    features, batch_size, num_rois,
                                    params, nsamples, use_xyz=True):
    new_features_list = []
    for i, level in enumerate(params):
        new_xyz = new_xyz_list[i].reshape(-1, 3)
        new_xyz_r = new_xyz_r_list[i].reshape(-1, 1)
        grouped = query_and_group_pyramid(
            xyz, xyz_batch_cnt, new_xyz, new_xyz_r,
            new_xyz_batch_cnt_list[i], features, nsamples[i], use_xyz=use_xyz)
        pooled = mlp_pool_level(grouped, level["weights"], level["shifts"],
                                level["c_out"])              # (M, c_out)
        c_out = level["c_out"]
        new_features_list.append(
            pooled.reshape(batch_size * num_rois, -1, c_out))
    return jnp.concatenate(new_features_list, axis=1)


# ----------------------------------------------------------------------------
# Demo
# ----------------------------------------------------------------------------
if __name__ == "__main__":
    key = jax.random.PRNGKey(0)
    batch_size, num_rois = 2, 2
    c_feat = 4
    nsamples = [16, 16]
    mlps = [[c_feat, 16, 32], [c_feat, 16, 32]]
    grid_sizes = [2, 1]          # per-level grid_size (grid_size^3 cells/roi)

    n_per_batch = 64
    N = batch_size * n_per_batch
    k1, k2, k3 = jax.random.split(key, 3)
    xyz = jax.random.uniform(k1, (N, 3), dtype=jnp.float32)
    features = jax.random.normal(k2, (N, c_feat), dtype=jnp.float32)
    xyz_batch_cnt = jnp.full((batch_size,), n_per_batch, dtype=jnp.int32)

    new_xyz_list, new_xyz_r_list, new_xyz_batch_cnt_list = [], [], []
    lvl_keys = jax.random.split(k3, len(grid_sizes))
    for i, g in enumerate(grid_sizes):
        m_per_batch = num_rois * g ** 3
        new_xyz_list.append(
            jax.random.uniform(lvl_keys[i], (batch_size, m_per_batch, 3),
                               dtype=jnp.float32))
        new_xyz_r_list.append(
            jnp.full((batch_size, m_per_batch, 1), 0.8, dtype=jnp.float32))
        new_xyz_batch_cnt_list.append(
            jnp.full((batch_size,), m_per_batch, dtype=jnp.int32))

    params = init_params(jax.random.PRNGKey(42), mlps, use_xyz=True)

    out = stack_sa_module_pyramid_forward(
        xyz, xyz_batch_cnt, new_xyz_list, new_xyz_r_list,
        new_xyz_batch_cnt_list, features, batch_size, num_rois,
        params, nsamples, use_xyz=True)
    out = jax.block_until_ready(out)

    expected = (batch_size * num_rois, sum(g ** 3 for g in grid_sizes),
                mlps[0][-1])
    assert out.shape == expected, (out.shape, expected)
    assert bool(jnp.all(jnp.isfinite(out)))
    print("KERNEL_OK")
</pallas_src>

<mosaic_0001>
module attributes {stable_mosaic.version = 11 : i64} {
  func.func @_mlp_pool_kernel(%arg0: i32, %arg1: memref<16x16x8xbf16, #tpu.memory_space<vmem>>, %arg2: memref<8x128xbf16, #tpu.memory_space<vmem>>, %arg3: memref<128x128xbf16, #tpu.memory_space<vmem>>, %arg4: memref<2x1x128xf32, #tpu.memory_space<vmem>>, %arg5: memref<16x128xf32, #tpu.memory_space<vmem>>) attributes {dimension_semantics = [#tpu.dimension_semantics<parallel>], iteration_bounds = array<i64: 2>, scalar_prefetch = 0 : i64, scratch_operands = 0 : i64, tpu.core_type = #tpu.core_type<tc>, window_params = [{transform_indices = @transform_0, window_bounds = array<i64: 16, 16, 8>}, {pipeline_mode = #tpu.pipeline_mode<synchronous>, transform_indices = @transform_1, window_bounds = array<i64: 8, 128>}, {pipeline_mode = #tpu.pipeline_mode<synchronous>, transform_indices = @transform_2, window_bounds = array<i64: 128, 128>}, {pipeline_mode = #tpu.pipeline_mode<synchronous>, transform_indices = @transform_3, window_bounds = array<i64: 2, 1, 128>}, {transform_indices = @transform_4, window_bounds = array<i64: 16, 128>}]} {
    %c0 = arith.constant 0 : index
    %c0_0 = arith.constant 0 : index
    %c0_1 = arith.constant 0 : index
    %0 = vector.load %arg1[%c0, %c0_0, %c0_1] : memref<16x16x8xbf16, #tpu.memory_space<vmem>>, vector<16x16x8xbf16>
    %1 = vector.shape_cast %0 : vector<16x16x8xbf16> to vector<256x8xbf16>
    %c0_2 = arith.constant 0 : index
    %c0_3 = arith.constant 0 : index
    %2 = vector.load %arg2[%c0_2, %c0_3] : memref<8x128xbf16, #tpu.memory_space<vmem>>, vector<8x128xbf16>
    %cst = arith.constant dense<0.000000e+00> : vector<256x128xf32>
    %3 = tpu.matmul %1, %2, %cst {dimension_numbers = #tpu.dot_dimension_numbers<[1], [0], [0], [1], [0, 0, 1, 1], [], []>} : vector<256x8xbf16>, vector<8x128xbf16>, vector<256x128xf32> -> vector<256x128xf32>
    %c0_4 = arith.constant 0 : index
    %c0_5 = arith.constant 0 : index
    %c0_6 = arith.constant 0 : index
    %4 = vector.load %arg4[%c0_4, %c0_5, %c0_6] : memref<2x1x128xf32, #tpu.memory_space<vmem>>, vector<1x1x128xf32>
    %5 = vector.shape_cast %4 : vector<1x1x128xf32> to vector<1x128xf32>
    %6 = vector.broadcast %5 : vector<1x128xf32> to vector<256x128xf32>
    %7 = arith.addf %3, %6 : vector<256x128xf32>
    %cst_7 = arith.constant 0.000000e+00 : f32
    %8 = vector.broadcast %cst_7 : f32 to vector<256x128xf32>
    %9 = arith.maximumf %7, %8 : vector<256x128xf32>
    %10 = arith.truncf %9 : vector<256x128xf32> to vector<256x128xbf16>
    %c0_8 = arith.constant 0 : index
    %c0_9 = arith.constant 0 : index
    %11 = vector.load %arg3[%c0_8, %c0_9] : memref<128x128xbf16, #tpu.memory_space<vmem>>, vector<128x128xbf16>
    %cst_10 = arith.constant dense<0.000000e+00> : vector<256x128xf32>
    %12 = tpu.matmul %10, %11, %cst_10 {dimension_numbers = #tpu.dot_dimension_numbers<[1], [0], [0], [1], [0, 0, 1, 1], [], []>} : vector<256x128xbf16>, vector<128x128xbf16>, vector<256x128xf32> -> vector<256x128xf32>
    %c1 = arith.constant 1 : index
    %c0_11 = arith.constant 0 : index
    %c0_12 = arith.constant 0 : index
    %13 = vector.load %arg4[%c1, %c0_11, %c0_12] : memref<2x1x128xf32, #tpu.memory_space<vmem>>, vector<1x1x128xf32>
    %14 = vector.shape_cast %13 : vector<1x1x128xf32> to vector<1x128xf32>
    %15 = vector.broadcast %14 : vector<1x128xf32> to vector<256x128xf32>
    %16 = arith.addf %12, %15 : vector<256x128xf32>
    %cst_13 = arith.constant 0.000000e+00 : f32
    %17 = vector.broadcast %cst_13 : f32 to vector<256x128xf32>
    %18 = arith.maximumf %16, %17 : vector<256x128xf32>
    %19 = vector.extract_strided_slice %18 {offsets = [0, 0], sizes = [16, 128], strides = [1, 1]} : vector<256x128xf32> to vector<16x128xf32>
    %20 = vector.extract_strided_slice %18 {offsets = [16, 0], sizes = [16, 128], strides = [1, 1]} : vector<256x128xf32> to vector<16x128xf32>
    %21 = arith.maximumf %19, %20 : vector<16x128xf32>
    %22 = vector.extract_strided_slice %18 {offsets = [32, 0], sizes = [16, 128], strides = [1, 1]} : vector<256x128xf32> to vector<16x128xf32>
    %23 = arith.maximumf %21, %22 : vector<16x128xf32>
    %24 = vector.extract_strided_slice %18 {offsets = [48, 0], sizes = [16, 128], strides = [1, 1]} : vector<256x128xf32> to vector<16x128xf32>
    %25 = arith.maximumf %23, %24 : vector<16x128xf32>
    %26 = vector.extract_strided_slice %18 {offsets = [64, 0], sizes = [16, 128], strides = [1, 1]} : vector<256x128xf32> to vector<16x128xf32>
    %27 = arith.maximumf %25, %26 : vector<16x128xf32>
    %28 = vector.extract_strided_slice %18 {offsets = [80, 0], sizes = [16, 128], strides = [1, 1]} : vector<256x128xf32> to vector<16x128xf32>
    %29 = arith.maximumf %27, %28 : vector<16x128xf32>
    %30 = vector.extract_strided_slice %18 {offsets = [96, 0], sizes = [16, 128], strides = [1, 1]} : vector<256x128xf32> to vector<16x128xf32>
    %31 = arith.maximumf %29, %30 : vector<16x128xf32>
    %32 = vector.extract_strided_slice %18 {offsets = [112, 0], sizes = [16, 128], strides = [1, 1]} : vector<256x128xf32> to vector<16x128xf32>
    %33 = arith.maximumf %31, %32 : vector<16x128xf32>
    %34 = vector.extract_strided_slice %18 {offsets = [128, 0], sizes = [16, 128], strides = [1, 1]} : vector<256x128xf32> to vector<16x128xf32>
    %35 = arith.maximumf %33, %34 : vector<16x128xf32>
    %36 = vector.extract_strided_slice %18 {offsets = [144, 0], sizes = [16, 128], strides = [1, 1]} : vector<256x128xf32> to vector<16x128xf32>
    %37 = arith.maximumf %35, %36 : vector<16x128xf32>
    %38 = vector.extract_strided_slice %18 {offsets = [160, 0], sizes = [16, 128], strides = [1, 1]} : vector<256x128xf32> to vector<16x128xf32>
    %39 = arith.maximumf %37, %38 : vector<16x128xf32>
    %40 = vector.extract_strided_slice %18 {offsets = [176, 0], sizes = [16, 128], strides = [1, 1]} : vector<256x128xf32> to vector<16x128xf32>
    %41 = arith.maximumf %39, %40 : vector<16x128xf32>
    %42 = vector.extract_strided_slice %18 {offsets = [192, 0], sizes = [16, 128], strides = [1, 1]} : vector<256x128xf32> to vector<16x128xf32>
    %43 = arith.maximumf %41, %42 : vector<16x128xf32>
    %44 = vector.extract_strided_slice %18 {offsets = [208, 0], sizes = [16, 128], strides = [1, 1]} : vector<256x128xf32> to vector<16x128xf32>
    %45 = arith.maximumf %43, %44 : vector<16x128xf32>
    %46 = vector.extract_strided_slice %18 {offsets = [224, 0], sizes = [16, 128], strides = [1, 1]} : vector<256x128xf32> to vector<16x128xf32>
    %47 = arith.maximumf %45, %46 : vector<16x128xf32>
    %48 = vector.extract_strided_slice %18 {offsets = [240, 0], sizes = [16, 128], strides = [1, 1]} : vector<256x128xf32> to vector<16x128xf32>
    %49 = arith.maximumf %47, %48 : vector<16x128xf32>
    %c0_14 = arith.constant 0 : index
    %c0_15 = arith.constant 0 : index
    %50 = vector.load %arg5[%c0_14, %c0_15] : memref<16x128xf32, #tpu.memory_space<vmem>>, vector<16x128xf32>
    tpu.vector_store %arg5[%c0_14, %c0_15], %49 {strides = array<i32>} : memref<16x128xf32, #tpu.memory_space<vmem>>, vector<16x128xf32>,
    return
  }
  func.func @transform_0(%arg0: i32) -> (i32, i32, i32) {
    %c0_i32 = arith.constant 0 : i32
    %c0_i32_0 = arith.constant 0 : i32
    %c0_i32_1 = arith.constant 0 : i32
    return %c0_i32, %arg0, %c0_i32_0 : i32, i32, i32
  }
  func.func @transform_1(%arg0: i32) -> (i32, i32) {
    %c0_i32 = arith.constant 0 : i32
    %c0_i32_0 = arith.constant 0 : i32
    %c0_i32_1 = arith.constant 0 : i32
    return %c0_i32, %c0_i32_0 : i32, i32
  }
  func.func @transform_2(%arg0: i32) -> (i32, i32) {
    %c0_i32 = arith.constant 0 : i32
    %c0_i32_0 = arith.constant 0 : i32
    %c0_i32_1 = arith.constant 0 : i32
    return %c0_i32, %c0_i32_0 : i32, i32
  }
  func.func @transform_3(%arg0: i32) -> (i32, i32, i32) {
    %c0_i32 = arith.constant 0 : i32
    %c0_i32_0 = arith.constant 0 : i32
    %c0_i32_1 = arith.constant 0 : i32
    %c0_i32_2 = arith.constant 0 : i32
    return %c0_i32, %c0_i32_0, %c0_i32_1 : i32, i32, i32
  }
  func.func @transform_4(%arg0: i32) -> (i32, i32) {
    %c0_i32 = arith.constant 0 : i32
    %c0_i32_0 = arith.constant 0 : i32
    return %arg0, %c0_i32 : i32, i32
  }
}

</mosaic_0001>

<llo_original>
// kernel: tpu_custom_call.1
$region0: #{tpu_custom_call.1}
  #allocation0 [shape = 'u32[]', space=smem, size = 0x4, offset = 0x4, fixed_abs, tag = 'smem constant byte address 0x4 - core index']
  #allocation1 [shape = 'u32[144,128]{1,0:T(1,128)}', space=vmem, size = 0x12000, scoped, tag = 'internal scratch']
  %s0 = inlined_call_operand.vmem [shape: bf16[16,32,8], index: 0, kind: input, shape index: {}]
  %s1 = inlined_call_operand.vmem [shape: bf16[8,128], index: 1, kind: input, shape index: {}]
  %s2 = inlined_call_operand.vmem [shape: bf16[128,128], index: 2, kind: input, shape index: {}]
  %s3 = inlined_call_operand.vmem [shape: f32[2,1,128], index: 3, kind: input, shape index: {}]
  %s4 = inlined_call_operand.hbm [shape: f32[32,128], index: 4, kind: output, shape index: {}]
  %s5 = sld [smem:[#allocation0]]
  $region90: #{tpu_custom_call.1} parent=0
    _
  %s7 = ssub.s32 1, %s5
  %s8 = scalar_select 0, %s7, %s5
  $region1: #{tpu_custom_call.1} parent=0
    #allocation2 [shape = 'u8[131072]{0}', space=vmem, size = 0x20000, scoped, tag = 'input window, operand 0']
    #allocation3 [shape = 'u8[16384]{0}', space=vmem, size = 0x4000, scoped, tag = 'output window, operand 0']
    #allocation4 [shape = 's32[2]{0}', space=sflag, size = 0x8, scoped, tag = 'scoped memory for tpu_custom_call.1']
    %9 = vsyncpa [#allocation4], 0
    %s10 = scalar_lea.sflag [#allocation4], 1
    %11 = vsyncpa %s10, 0
    loop: start=0, step=1, limit=4
    $region2: #{tpu_custom_call.1} parent=1 // loop_pre_header
      _
    $region3: #{tpu_custom_call.1} parent=1 // loop_header
      %s13 = sphi 0, %s17
      %p14 = scmp.ge.s32.totalorder %s13, 4
      %s23 = sphi 0, %s25
      %s26 = sphi 0, %s23
      %s27 = sphi 0, %s26
      %s43 = sphi 0, %s27
      %s47 = sphi 0, %s47
      %s49 = sphi 0, %s47
      %s50 = sphi 0, %s49
      %s64 = sphi 0, %s50
      %s68 = sphi 0, %s68
      %s70 = sphi 0, %s68
      %s71 = sphi 0, %s70
      %s85 = sphi 0, %s71
      %s89 = sphi 0, %s89
      %s91 = sphi 0, %s89
      %s92 = sphi 0, %s91
      %s106 = sphi 0, %s92
      %s112 = sphi 0, %s114
      %s115 = sphi 0, %s112
      %s116 = sphi 0, %s115
      %s132 = sphi 0, %s116
    $region4: #{tpu_custom_call.1} parent=1 // loop_header_branch
      %16 = sbr.rel (%p14) target = $region8
    $region5: #{tpu_custom_call.1} parent=1 // loop_body
      %s18 = ssub.s32 %s13, 1
      %s19 = ssub.s32 %s13, 2
      %s20 = sadd.s32 %s13, 1
      %s21 = ssub.s32 %s13, %s20
      %p22 = scmp.eq.s32.totalorder %s21, 0
      %s24 = sadd.s32 %s23, 1
      %s25 = scalar_select %p22, %s23, %s24
      %p28 = pneg %p22
      %p29 = scmp.eq.s32.totalorder %s13, 1
      %p30 = por %p28, %p29
      %p31 = scmp.ne.s32.totalorder %s23, %s26
      %p32 = scmp.eq.s32.totalorder %s13, 0
      %p33 = por %p31, %p32
      %p34 = scmp.ne.s32.totalorder %s23, %s26
      %p35 = scmp.eq.s32.totalorder %s18, 1
      %p36 = por %p34, %p35
      %p37 = scmp.ne.s32.totalorder %s26, %s27
      %p38 = scmp.eq.s32.totalorder %s18, 0
      %p39 = por %p37, %p38
      %p40 = scmp.ne.s32.totalorder %s26, %s27
      %p41 = scmp.eq.s32.totalorder %s19, 1
      %p42 = por %p40, %p41
      %p44 = scmp.ne.s32.totalorder %s27, %s43
      %p45 = scmp.eq.s32.totalorder %s19, 0
      %p46 = por %p44, %p45
      %s48 = sadd.s32 %s47, 1
      %p51 = scmp.eq.s32.totalorder %s13, 1
      %p52 = scmp.ne.s32.totalorder %s47, %s49
      %p53 = scmp.eq.s32.totalorder %s13, 0
      %p54 = por %p52, %p53
      %p55 = scmp.ne.s32.totalorder %s47, %s49
      %p56 = scmp.eq.s32.totalorder %s18, 1
      %p57 = por %p55, %p56
      %p58 = scmp.ne.s32.totalorder %s49, %s50
      %p59 = scmp.eq.s32.totalorder %s18, 0
      %p60 = por %p58, %p59
      %p61 = scmp.ne.s32.totalorder %s49, %s50
      %p62 = scmp.eq.s32.totalorder %s19, 1
      %p63 = por %p61, %p62
      %p65 = scmp.ne.s32.totalorder %s50, %s64
      %p66 = scmp.eq.s32.totalorder %s19, 0
      %p67 = por %p65, %p66
      %s69 = sadd.s32 %s68, 1
      %p72 = scmp.eq.s32.totalorder %s13, 1
      %p73 = scmp.ne.s32.totalorder %s68, %s70
      %p74 = scmp.eq.s32.totalorder %s13, 0
      %p75 = por %p73, %p74
      %p76 = scmp.ne.s32.totalorder %s68, %s70
      %p77 = scmp.eq.s32.totalorder %s18, 1
      %p78 = por %p76, %p77
      %p79 = scmp.ne.s32.totalorder %s70, %s71
      %p80 = scmp.eq.s32.totalorder %s18, 0
      %p81 = por %p79, %p80
      %p82 = scmp.ne.s32.totalorder %s70, %s71
      %p83 = scmp.eq.s32.totalorder %s19, 1
      %p84 = por %p82, %p83
      %p86 = scmp.ne.s32.totalorder %s71, %s85
      %p87 = scmp.eq.s32.totalorder %s19, 0
      %p88 = por %p86, %p87
      %s90 = sadd.s32 %s89, 1
      %p93 = scmp.eq.s32.totalorder %s13, 1
      %p94 = scmp.ne.s32.totalorder %s89, %s91
      %p95 = scmp.eq.s32.totalorder %s13, 0
      %p96 = por %p94, %p95
      %p97 = scmp.ne.s32.totalorder %s89, %s91
      %p98 = scmp.eq.s32.totalorder %s18, 1
      %p99 = por %p97, %p98
      %p100 = scmp.ne.s32.totalorder %s91, %s92
      %p101 = scmp.eq.s32.totalorder %s18, 0
      %p102 = por %p100, %p101
      %p103 = scmp.ne.s32.totalorder %s91, %s92
      %p104 = scmp.eq.s32.totalorder %s19, 1
      %p105 = por %p103, %p104
      %p107 = scmp.ne.s32.totalorder %s92, %s106
      %p108 = scmp.eq.s32.totalorder %s19, 0
      %p109 = por %p107, %p108
      %s110 = ssub.s32 %s13, %s20
      %p111 = scmp.eq.s32.totalorder %s110, 0
      %s113 = sadd.s32 %s112, 1
      %s114 = scalar_select %p111, %s112, %s113
      %p117 = pneg %p111
      %p118 = scmp.eq.s32.totalorder %s13, 1
      %p119 = por %p117, %p118
      %p120 = scmp.ne.s32.totalorder %s112, %s115
      %p121 = scmp.eq.s32.totalorder %s13, 0
      %p122 = por %p120, %p121
      %p123 = scmp.ne.s32.totalorder %s112, %s115
      %p124 = scmp.eq.s32.totalorder %s18, 1
      %p125 = por %p123, %p124
      %p126 = scmp.ne.s32.totalorder %s115, %s116
      %p127 = scmp.eq.s32.totalorder %s18, 0
      %p128 = por %p126, %p127
      %p129 = scmp.ne.s32.totalorder %s115, %s116
      %p130 = scmp.eq.s32.totalorder %s19, 1
      %p131 = por %p129, %p130
      %p133 = scmp.ne.s32.totalorder %s116, %s132
      %p134 = scmp.eq.s32.totalorder %s19, 0
      %p135 = por %p133, %p134
      %p136 = scmp.le.s32.totalorder 1, %s13
      %p137 = scmp.lt.s32.totalorder %s13, 3
      %p138 = pnand %p136, %p137
      %p139 = pneg %p138
      // Predicated region
      $region9: #{tpu_custom_call.1} parent=5 // pred_check
        _
      $region10: #{tpu_custom_call.1} parent=5 // pred_check_branch
        %141 = sbr.rel (%p138) target = $region12
      $region11: #{tpu_custom_call.1} parent=5 // pred_region
        %s142 = ssub.s32 %s13, 1
        // Predicated region
        $region13: #{tpu_custom_call.1} parent=11 // pred_check
          %p143 = pneg %p60
        $region14: #{tpu_custom_call.1} parent=11 // pred_check_branch
          %145 = sbr.rel (%p143) target = $region16
        $region15: #{tpu_custom_call.1} parent=11 // pred_region
          _
        $region16: #{tpu_custom_call.1} parent=11 // pred_fallthru
          _
        // Predicated region
        $region17: #{tpu_custom_call.1} parent=11 // pred_check
          %p146 = pneg %p81
        $region18: #{tpu_custom_call.1} parent=11 // pred_check_branch
          %148 = sbr.rel (%p146) target = $region20
        $region19: #{tpu_custom_call.1} parent=11 // pred_region
          _
        $region20: #{tpu_custom_call.1} parent=11 // pred_fallthru
          _
        // Predicated region
        $region21: #{tpu_custom_call.1} parent=11 // pred_check
          %p149 = pneg %p102
        $region22: #{tpu_custom_call.1} parent=11 // pred_check_branch
          %151 = sbr.rel (%p149) target = $region24
        $region23: #{tpu_custom_call.1} parent=11 // pred_region
          _
        $region24: #{tpu_custom_call.1} parent=11 // pred_fallthru
          _
      $region12: #{tpu_custom_call.1} parent=5 // pred_fallthru
        _
      %p152 = scmp.lt.s32.totalorder %s13, 2
      // Predicated region
      $region25: #{tpu_custom_call.1} parent=5 // pred_check
        %p153 = pneg %p152
      $region26: #{tpu_custom_call.1} parent=5 // pred_check_branch
        %155 = sbr.rel (%p153) target = $region28
      $region27: #{tpu_custom_call.1} parent=5 // pred_region
        // Predicated region
        $region29: #{tpu_custom_call.1} parent=27 // pred_check
          %p156 = pneg %p33
        $region30: #{tpu_custom_call.1} parent=27 // pred_check_branch
          %158 = sbr.rel (%p156) target = $region32
        $region31: #{tpu_custom_call.1} parent=27 // pred_region
          %s159 = sand.u32 %s23, 1
          %s160 = sand.u32 %s23, 1
          %s161 = smul.addr %s160, 128
          %s162 = scalar_lea.vmem [#allocation2], %s161
          %s163 = smul.u32 2, %s13
          %s164 = smul.addr %s163, 4
          %s165 = scalar_lea.vmem %s0, %s164
          // Predicated region
          $region33: #{tpu_custom_call.1} parent=31 // pred_check
            _
          $region34: #{tpu_custom_call.1} parent=31 // pred_check_branch
            %167 = sbr.rel (0) target = $region36
          $region35: #{tpu_custom_call.1} parent=31 // pred_region
            // Predicated region
            $region37: #{tpu_custom_call.1} parent=35 // pred_check
              _
            $region38: #{tpu_custom_call.1} parent=35 // pred_check_branch
              %169 = sbr.rel target = $region40
            $region39: #{tpu_custom_call.1} parent=35 // pred_region
              // Predicated region
              $region52: #{tpu_custom_call.1} parent=39 // pred_check
                _
              $region53: #{tpu_custom_call.1} parent=39 // pred_check_branch
                %247 = sbr.rel (0) target = $region55
              $region54: #{tpu_custom_call.1} parent=39 // pred_region
                loop: start=0, step=1, limit=1
                $region56: #{tpu_custom_call.1} parent=54 // loop_pre_header
                  _
                $region57: #{tpu_custom_call.1} parent=54 // loop_header
                  %s249 = sphi 0, %s253
                  %p250 = scmp.ge.s32.totalorder %s249, 1
                  %s254 = sphi %s165, %s165
                  %s255 = sphi %s162, %s162
                $region58: #{tpu_custom_call.1} parent=54 // loop_header_branch
                  %252 = sbr.rel (%p250) target = $region62
                $region59: #{tpu_custom_call.1} parent=54 // loop_body
                  _
                $region60: #{tpu_custom_call.1} parent=54 // loop_footer
                  %s253 = sadd.s32 1, %s249
                $region61: #{tpu_custom_call.1} parent=54 // loop_footer_branch
                  %248 = sbr.rel target = $region57
                $region62: #{tpu_custom_call.1} parent=54 // loop_exit
                  _
                %s257 = ssub.s32 16, 1
                loop: start=0, step=1, limit=1
                $region63: #{tpu_custom_call.1} parent=54 // loop_pre_header
                  _
                $region64: #{tpu_custom_call.1} parent=54 // loop_header
                  %s259 = sphi 0, %s263
                  %p260 = scmp.ge.s32.totalorder %s259, 1
                  %s264 = sphi %s165, %s165
                  %s265 = sphi %s162, %s162
                $region65: #{tpu_custom_call.1} parent=54 // loop_header_branch
                  %262 = sbr.rel (%p260) target = $region69
                $region66: #{tpu_custom_call.1} parent=54 // loop_body
                  %v266 = vld [vmem:[%s264] sm:%s257]
                  %267 = vst [vmem:[%s265] sm:%s257] %v266
                  %v268 = vld [vmem:[%s264 + $0x4] sm:%s257]
                  %269 = vst [vmem:[%s265 + $0x4] sm:%s257] %v268
                  %v270 = vld [vmem:[%s264 + $0x10] sm:%s257]
                  %271 = vst [vmem:[%s265 + $0x8] sm:%s257] %v270
                  %v272 = vld [vmem:[%s264 + $0x14] sm:%s257]
                  %273 = vst [vmem:[%s265 + $0xc] sm:%s257] %v272
                  %v274 = vld [vmem:[%s264 + $0x20] sm:%s257]
                  %275 = vst [vmem:[%s265 + $0x10] sm:%s257] %v274
                  %v276 = vld [vmem:[%s264 + $0x24] sm:%s257]
                  %277 = vst [vmem:[%s265 + $0x14] sm:%s257] %v276
                  %v278 = vld [vmem:[%s264 + $0x30] sm:%s257]
                  %279 = vst [vmem:[%s265 + $0x18] sm:%s257] %v278
                  %v280 = vld [vmem:[%s264 + $0x34] sm:%s257]
                  %281 = vst [vmem:[%s265 + $0x1c] sm:%s257] %v280
                  %v282 = vld [vmem:[%s264 + $0x40] sm:%s257]
                  %283 = vst [vmem:[%s265 + $0x20] sm:%s257] %v282
                  %v284 = vld [vmem:[%s264 + $0x44] sm:%s257]
                  %285 = vst [vmem:[%s265 + $0x24] sm:%s257] %v284
                  %v286 = vld [vmem:[%s264 + $0x50] sm:%s257]
                  %287 = vst [vmem:[%s265 + $0x28] sm:%s257] %v286
                  %v288 = vld [vmem:[%s264 + $0x54] sm:%s257]
                  %289 = vst [vmem:[%s265 + $0x2c] sm:%s257] %v288
                  %v290 = vld [vmem:[%s264 + $0x60] sm:%s257]
                  %291 = vst [vmem:[%s265 + $0x30] sm:%s257] %v290
                  %v292 = vld [vmem:[%s264 + $0x64] sm:%s257]
                  %293 = vst [vmem:[%s265 + $0x34] sm:%s257] %v292
                  %v294 = vld [vmem:[%s264 + $0x70] sm:%s257]
                  %295 = vst [vmem:[%s265 + $0x38] sm:%s257] %v294
                  %v296 = vld [vmem:[%s264 + $0x74] sm:%s257]
                  %297 = vst [vmem:[%s265 + $0x3c] sm:%s257] %v296
                  %v298 = vld [vmem:[%s264 + $0x80] sm:%s257]
                  %299 = vst [vmem:[%s265 + $0x40] sm:%s257] %v298
                  %v300 = vld [vmem:[%s264 + $0x84] sm:%s257]
                  %301 = vst [vmem:[%s265 + $0x44] sm:%s257] %v300
                  %v302 = vld [vmem:[%s264 + $0x90] sm:%s257]
                  %303 = vst [vmem:[%s265 + $0x48] sm:%s257] %v302
                  %v304 = vld [vmem:[%s264 + $0x94] sm:%s257]
                  %305 = vst [vmem:[%s265 + $0x4c] sm:%s257] %v304
                  %v306 = vld [vmem:[%s264 + $0xa0] sm:%s257]
                  %307 = vst [vmem:[%s265 + $0x50] sm:%s257] %v306
                  %v308 = vld [vmem:[%s264 + $0xa4] sm:%s257]
                  %309 = vst [vmem:[%s265 + $0x54] sm:%s257] %v308
                  %v310 = vld [vmem:[%s264 + $0xb0] sm:%s257]
                  %311 = vst [vmem:[%s265 + $0x58] sm:%s257] %v310
                  %v312 = vld [vmem:[%s264 + $0xb4] sm:%s257]
                  %313 = vst [vmem:[%s265 + $0x5c] sm:%s257] %v312
                  %v314 = vld [vmem:[%s264 + $0xc0] sm:%s257]
                  %315 = vst [vmem:[%s265 + $0x60] sm:%s257] %v314
                  %v316 = vld [vmem:[%s264 + $0xc4] sm:%s257]
                  %317 = vst [vmem:[%s265 + $0x64] sm:%s257] %v316
                  %v318 = vld [vmem:[%s264 + $0xd0] sm:%s257]
                  %319 = vst [vmem:[%s265 + $0x68] sm:%s257] %v318
                  %v320 = vld [vmem:[%s264 + $0xd4] sm:%s257]
                  %321 = vst [vmem:[%s265 + $0x6c] sm:%s257] %v320
                  %v322 = vld [vmem:[%s264 + $0xe0] sm:%s257]
                  %323 = vst [vmem:[%s265 + $0x70] sm:%s257] %v322
                  %v324 = vld [vmem:[%s264 + $0xe4] sm:%s257]
                  %325 = vst [vmem:[%s265 + $0x74] sm:%s257] %v324
                  %v326 = vld [vmem:[%s264 + $0xf0] sm:%s257]
                  %327 = vst [vmem:[%s265 + $0x78] sm:%s257] %v326
                  %v328 = vld [vmem:[%s264 + $0xf4] sm:%s257]
                  %329 = vst [vmem:[%s265 + $0x7c] sm:%s257] %v328
                $region67: #{tpu_custom_call.1} parent=54 // loop_footer
                  %s263 = sadd.s32 1, %s259
                $region68: #{tpu_custom_call.1} parent=54 // loop_footer_branch
                  %258 = sbr.rel target = $region64
                $region69: #{tpu_custom_call.1} parent=54 // loop_exit
                  _
              $region55: #{tpu_custom_call.1} parent=39 // pred_fallthru
                _
            $region40: #{tpu_custom_call.1} parent=35 // pred_fallthru
              _
            // Predicated region
            $region41: #{tpu_custom_call.1} parent=35 // pred_check
              _
            $region42: #{tpu_custom_call.1} parent=35 // pred_check_branch
              %171 = sbr.rel (0) target = $region44
            $region43: #{tpu_custom_call.1} parent=35 // pred_region
              %s173 = ssub.s32 16, 1
              loop: start=0, step=1, limit=1
              $region45: #{tpu_custom_call.1} parent=43 // loop_pre_header
                _
              $region46: #{tpu_custom_call.1} parent=43 // loop_header
                %s175 = sphi 0, %s179
                %p176 = scmp.ge.s32.totalorder %s175, 1
                %s180 = sphi %s165, %s165
                %s181 = sphi %s162, %s162
              $region47: #{tpu_custom_call.1} parent=43 // loop_header_branch
                %178 = sbr.rel (%p176) target = $region51
              $region48: #{tpu_custom_call.1} parent=43 // loop_body
                %v182 = vld [vmem:[%s180] sm:%s173]
                %183 = vst [vmem:[%s181] sm:%s173] %v182
                %v184 = vld [vmem:[%s180 + $0x4] sm:%s173]
                %185 = vst [vmem:[%s181 + $0x4] sm:%s173] %v184
                %v186 = vld [vmem:[%s180 + $0x10] sm:%s173]
                %187 = vst [vmem:[%s181 + $0x8] sm:%s173] %v186
                %v188 = vld [vmem:[%s180 + $0x14] sm:%s173]
                %189 = vst [vmem:[%s181 + $0xc] sm:%s173] %v188
                %v190 = vld [vmem:[%s180 + $0x20] sm:%s173]
                %191 = vst [vmem:[%s181 + $0x10] sm:%s173] %v190
                %v192 = vld [vmem:[%s180 + $0x24] sm:%s173]
                %193 = vst [vmem:[%s181 + $0x14] sm:%s173] %v192
                %v194 = vld [vmem:[%s180 + $0x30] sm:%s173]
                %195 = vst [vmem:[%s181 + $0x18] sm:%s173] %v194
                %v196 = vld [vmem:[%s180 + $0x34] sm:%s173]
                %197 = vst [vmem:[%s181 + $0x1c] sm:%s173] %v196
                %v198 = vld [vmem:[%s180 + $0x40] sm:%s173]
                %199 = vst [vmem:[%s181 + $0x20] sm:%s173] %v198
                %v200 = vld [vmem:[%s180 + $0x44] sm:%s173]
                %201 = vst [vmem:[%s181 + $0x24] sm:%s173] %v200
                %v202 = vld [vmem:[%s180 + $0x50] sm:%s173]
                %203 = vst [vmem:[%s181 + $0x28] sm:%s173] %v202
                %v204 = vld [vmem:[%s180 + $0x54] sm:%s173]
                %205 = vst [vmem:[%s181 + $0x2c] sm:%s173] %v204
                %v206 = vld [vmem:[%s180 + $0x60] sm:%s173]
                %207 = vst [vmem:[%s181 + $0x30] sm:%s173] %v206
                %v208 = vld [vmem:[%s180 + $0x64] sm:%s173]
                %209 = vst [vmem:[%s181 + $0x34] sm:%s173] %v208
                %v210 = vld [vmem:[%s180 + $0x70] sm:%s173]
                %211 = vst [vmem:[%s181 + $0x38] sm:%s173] %v210
                %v212 = vld [vmem:[%s180 + $0x74] sm:%s173]
                %213 = vst [vmem:[%s181 + $0x3c] sm:%s173] %v212
                %v214 = vld [vmem:[%s180 + $0x80] sm:%s173]
                %215 = vst [vmem:[%s181 + $0x40] sm:%s173] %v214
                %v216 = vld [vmem:[%s180 + $0x84] sm:%s173]
                %217 = vst [vmem:[%s181 + $0x44] sm:%s173] %v216
                %v218 = vld [vmem:[%s180 + $0x90] sm:%s173]
                %219 = vst [vmem:[%s181 + $0x48] sm:%s173] %v218
                %v220 = vld [vmem:[%s180 + $0x94] sm:%s173]
                %221 = vst [vmem:[%s181 + $0x4c] sm:%s173] %v220
                %v222 = vld [vmem:[%s180 + $0xa0] sm:%s173]
                %223 = vst [vmem:[%s181 + $0x50] sm:%s173] %v222
                %v224 = vld [vmem:[%s180 + $0xa4] sm:%s173]
                %225 = vst [vmem:[%s181 + $0x54] sm:%s173] %v224
                %v226 = vld [vmem:[%s180 + $0xb0] sm:%s173]
                %227 = vst [vmem:[%s181 + $0x58] sm:%s173] %v226
                %v228 = vld [vmem:[%s180 + $0xb4] sm:%s173]
                %229 = vst [vmem:[%s181 + $0x5c] sm:%s173] %v228
                %v230 = vld [vmem:[%s180 + $0xc0] sm:%s173]
                %231 = vst [vmem:[%s181 + $0x60] sm:%s173] %v230
                %v232 = vld [vmem:[%s180 + $0xc4] sm:%s173]
                %233 = vst [vmem:[%s181 + $0x64] sm:%s173] %v232
                %v234 = vld [vmem:[%s180 + $0xd0] sm:%s173]
                %235 = vst [vmem:[%s181 + $0x68] sm:%s173] %v234
                %v236 = vld [vmem:[%s180 + $0xd4] sm:%s173]
                %237 = vst [vmem:[%s181 + $0x6c] sm:%s173] %v236
                %v238 = vld [vmem:[%s180 + $0xe0] sm:%s173]
                %239 = vst [vmem:[%s181 + $0x70] sm:%s173] %v238
                %v240 = vld [vmem:[%s180 + $0xe4] sm:%s173]
                %241 = vst [vmem:[%s181 + $0x74] sm:%s173] %v240
                %v242 = vld [vmem:[%s180 + $0xf0] sm:%s173]
                %243 = vst [vmem:[%s181 + $0x78] sm:%s173] %v242
                %v244 = vld [vmem:[%s180 + $0xf4] sm:%s173]
                %245 = vst [vmem:[%s181 + $0x7c] sm:%s173] %v244
              $region49: #{tpu_custom_call.1} parent=43 // loop_footer
                %s179 = sadd.s32 1, %s175
              $region50: #{tpu_custom_call.1} parent=43 // loop_footer_branch
                %174 = sbr.rel target = $region46
              $region51: #{tpu_custom_call.1} parent=43 // loop_exit
                _
            $region44: #{tpu_custom_call.1} parent=35 // pred_fallthru
              _
          $region36: #{tpu_custom_call.1} parent=31 // pred_fallthru
            _
          %330 = vnop
        $region32: #{tpu_custom_call.1} parent=27 // pred_fallthru
          _
      $region28: #{tpu_custom_call.1} parent=5 // pred_fallthru
        _
      %p331 = scmp.le.s32.totalorder 1, %s13
      %p332 = scmp.lt.s32.totalorder %s13, 3
      %p333 = pnand %p331, %p332
      %p334 = pneg %p333
      // Predicated region
      $region70: #{tpu_custom_call.1} parent=5 // pred_check
        _
      $region71: #{tpu_custom_call.1} parent=5 // pred_check_branch
        %336 = sbr.rel (%p333) target = $region73
      $region72: #{tpu_custom_call.1} parent=5 // pred_region
        %s337 = ssub.s32 %s13, 1
        %s338 = sand.u32 %s26, 1
        %s339 = sand.u32 %s26, 1
        %s340 = smul.addr %s339, 128
        %s341 = scalar_lea.vmem [#allocation2], %s340
        // Predicated region
        $region74: #{tpu_custom_call.1} parent=72 // pred_check
          %p342 = pneg %p39
        $region75: #{tpu_custom_call.1} parent=72 // pred_check_branch
          %344 = sbr.rel (%p342) target = $region77
        $region76: #{tpu_custom_call.1} parent=72 // pred_region
          _
        $region77: #{tpu_custom_call.1} parent=72 // pred_fallthru
          _
        %s345 = sand.u32 %s26, 1
        %s346 = sand.u32 %s26, 1
        %s347 = smul.addr %s346, 128
        %s348 = scalar_lea.vmem [#allocation2], %s347
        %p349 = pneg %p39
        %p350 = pneg %p36
        %p351 = pneg %p60
        %p352 = pneg %p57
        %p353 = pneg %p81
        %p354 = pneg %p78
        %p355 = pneg %p102
        %p356 = pneg %p99
        %p357 = pneg %p128
        %p358 = pneg %p125
        %s359 = sand.u32 %s115, 1
        %s360 = scalar_lea.sflag [#allocation4], %s359
        %s361 = sand.u32 %s115, 1
        %s362 = smul.addr %s361, 16
        %s363 = scalar_lea.vmem [#allocation3], %s362
        %s364 = smul.u32 2, %s18
        %s365 = smul.u32 2, %s18
        %v367 = vld [vmem:[%s341] sm:$0xf]
        %v368 = vld [vmem:[%s341 + $0x4] sm:$0xf]
        %v369 = vld [vmem:[%s341 + $0x8] sm:$0xf]
        %v370 = vld [vmem:[%s341 + $0xc] sm:$0xf]
        %v371 = vld [vmem:[%s341 + $0x10] sm:$0xf]
        %v372 = vld [vmem:[%s341 + $0x14] sm:$0xf]
        %v373 = vld [vmem:[%s341 + $0x18] sm:$0xf]
        %v374 = vld [vmem:[%s341 + $0x1c] sm:$0xf]
        %v375 = vld [vmem:[%s341 + $0x20] sm:$0xf]
        %v376 = vld [vmem:[%s341 + $0x24] sm:$0xf]
        %v377 = vld [vmem:[%s341 + $0x28] sm:$0xf]
        %v378 = vld [vmem:[%s341 + $0x2c] sm:$0xf]
        %v379 = vld [vmem:[%s341 + $0x30] sm:$0xf]
        %v380 = vld [vmem:[%s341 + $0x34] sm:$0xf]
        %v381 = vld [vmem:[%s341 + $0x38] sm:$0xf]
        %v382 = vld [vmem:[%s341 + $0x3c] sm:$0xf]
        %v383 = vld [vmem:[%s341 + $0x40] sm:$0xf]
        %v384 = vld [vmem:[%s341 + $0x44] sm:$0xf]
        %v385 = vld [vmem:[%s341 + $0x48] sm:$0xf]
        %v386 = vld [vmem:[%s341 + $0x4c] sm:$0xf]
        %v387 = vld [vmem:[%s341 + $0x50] sm:$0xf]
        %v388 = vld [vmem:[%s341 + $0x54] sm:$0xf]
        %v389 = vld [vmem:[%s341 + $0x58] sm:$0xf]
        %v390 = vld [vmem:[%s341 + $0x5c] sm:$0xf]
        %v391 = vld [vmem:[%s341 + $0x60] sm:$0xf]
        %v392 = vld [vmem:[%s341 + $0x64] sm:$0xf]
        %v393 = vld [vmem:[%s341 + $0x68] sm:$0xf]
        %v394 = vld [vmem:[%s341 + $0x6c] sm:$0xf]
        %v395 = vld [vmem:[%s341 + $0x70] sm:$0xf]
        %v396 = vld [vmem:[%s341 + $0x74] sm:$0xf]
        %v397 = vld [vmem:[%s341 + $0x78] sm:$0xf]
        %v398 = vld [vmem:[%s341 + $0x7c] sm:$0xf]
        %v399 = vld [vmem:[%s1] sm:$0xf]
        %v400 = vld [vmem:[%s3] sm:$0x1]
        %v402 = vlaneseq
        %v403 = vshrl.u32 %v402, 7
        %v404 = vsub.s32 0, %v403
        %v405 = vrot.slane %v400, %v404
        %v439 = vunpack.c.l.b16 %v367
        %v440 = vunpack.c.l.b16 %v368
        %v441 = vunpack.c.l.b16 %v369
        %v442 = vunpack.c.l.b16 %v370
        %v443 = vunpack.c.l.b16 %v371
        %v444 = vunpack.c.l.b16 %v372
        %v445 = vunpack.c.l.b16 %v373
        %v446 = vunpack.c.l.b16 %v374
        %v447 = vunpack.c.l.b16 %v375
        %v448 = vunpack.c.l.b16 %v376
        %v449 = vunpack.c.l.b16 %v377
        %v450 = vunpack.c.l.b16 %v378
        %v451 = vunpack.c.l.b16 %v379
        %v452 = vunpack.c.l.b16 %v380
        %v453 = vunpack.c.l.b16 %v381
        %v454 = vunpack.c.l.b16 %v382
        %v455 = vunpack.c.l.b16 %v383
        %v456 = vunpack.c.l.b16 %v384
        %v457 = vunpack.c.l.b16 %v385
        %v458 = vunpack.c.l.b16 %v386
        %v459 = vunpack.c.l.b16 %v387
        %v460 = vunpack.c.l.b16 %v388
        %v461 = vunpack.c.l.b16 %v389
        %v462 = vunpack.c.l.b16 %v390
        %v463 = vunpack.c.l.b16 %v391
        %v464 = vunpack.c.l.b16 %v392
        %v465 = vunpack.c.l.b16 %v393
        %v466 = vunpack.c.l.b16 %v394
        %v467 = vunpack.c.l.b16 %v395
        %v468 = vunpack.c.l.b16 %v396
        %v469 = vunpack.c.l.b16 %v397
        %v470 = vunpack.c.l.b16 %v398
        %v471 = vpack.c.b16 %v440, %v439
        %v472 = vpack.c.b16 %v442, %v441
        %v473 = vpack.c.b16 %v444, %v443
        %v474 = vpack.c.b16 %v446, %v445
        %v475 = vpack.c.b16 %v448, %v447
        %v476 = vpack.c.b16 %v450, %v449
        %v477 = vpack.c.b16 %v452, %v451
        %v478 = vpack.c.b16 %v454, %v453
        %v479 = vpack.c.b16 %v456, %v455
        %v480 = vpack.c.b16 %v458, %v457
        %v481 = vpack.c.b16 %v460, %v459
        %v482 = vpack.c.b16 %v462, %v461
        %v483 = vpack.c.b16 %v464, %v463
        %v484 = vpack.c.b16 %v466, %v465
        %v485 = vpack.c.b16 %v468, %v467
        %v486 = vpack.c.b16 %v470, %v469
        %vm487 = vcmask 64512
        %v489 = vsel %vm487, %v471, 0
        %v492 = vsel %vm487, %v472, 0
        %v495 = vsel %vm487, %v473, 0
        %v498 = vsel %vm487, %v474, 0
        %v501 = vsel %vm487, %v475, 0
        %v504 = vsel %vm487, %v476, 0
        %v507 = vsel %vm487, %v477, 0
        %v510 = vsel %vm487, %v478, 0
        %v513 = vsel %vm487, %v479, 0
        %v516 = vsel %vm487, %v480, 0
        %v519 = vsel %vm487, %v481, 0
        %v522 = vsel %vm487, %v482, 0
        %v525 = vsel %vm487, %v483, 0
        %v528 = vsel %vm487, %v484, 0
        %v531 = vsel %vm487, %v485, 0
        %v534 = vsel %vm487, %v486, 0
        %vm536 = vcmask 1043456
        %v538 = vsel %vm536, %v399, 0
        %540 = vmatprep.subr.bf16.mxu0 0
        %541 = vmatpush1.bf16.msra.mxu0 0
        %542 = vmatprep.subr.bf16.mxu0 0
        %543 = vmatpush1.bf16.msra.mxu0 0
        %544 = vmatprep.subr.bf16.mxu0 0
        %545 = vmatpush1.bf16.msra.mxu0 0
        %546 = vmatprep.subr.bf16.mxu0 0
        %547 = vmatpush1.bf16.msra.mxu0 0
        %548 = vmatprep.subr.bf16.mxu0 0
        %549 = vmatpush1.bf16.msra.mxu0 0
        %550 = vmatprep.subr.bf16.mxu0 0
        %551 = vmatpush1.bf16.msra.mxu0 0
        %552 = vmatprep.subr.bf16.mxu0 0
        %553 = vmatpush1.bf16.msra.mxu0 0
        %554 = vmatprep.subr.bf16.mxu0 0
        %555 = vmatpush1.bf16.msra.mxu0 %v538
        %556 = vmatprep.subr.bf16.mxu0 0
        %557 = vmatpush2.bf16.msra.mxu0 0
        %558 = vmatprep.subr.bf16.mxu0 0
        %559 = vmatpush2.bf16.msra.mxu0 0
        %560 = vmatprep.subr.bf16.mxu0 0
        %561 = vmatpush2.bf16.msra.mxu0 0
        %562 = vmatprep.subr.bf16.mxu0 0
        %563 = vmatpush2.bf16.msra.mxu0 0
        %564 = vmatprep.subr.bf16.mxu0 0
        %565 = vmatpush2.bf16.msra.mxu0 0
        %566 = vmatprep.subr.bf16.mxu0 0
        %567 = vmatpush2.bf16.msra.mxu0 0
        %568 = vmatprep.subr.bf16.mxu0 0
        %569 = vmatpush2.bf16.msra.mxu0 0
        %570 = vmatprep.subr.bf16.mxu0 0
        %571 = vmatpush2.bf16.msra.mxu0 0
        %572 = vmatprep.mubr.bf16.mxu0 0
        %573 = vmatmul.mubr.bf16.gmra.mxu0 %v489
        %v574 = vpop.f32.mrf.mxu0
        %v575 = vadd.f32 %v405, %v574
        %v576 = vpop.f32.mrf.mxu0
        %v577 = vpop.f32.mrf.mxu0
        %v578 = vadd.f32 %v405, %v577
        %v579 = vpop.f32.mrf.mxu0
        %580 = vmatprep.mubr.bf16.mxu0 0
        %581 = vmatmul.mubr.bf16.gmra.mxu0 %v492
        %v582 = vpop.f32.mrf.mxu0
        %v583 = vadd.f32 %v405, %v582
        %v584 = vpop.f32.mrf.mxu0
        %v585 = vpop.f32.mrf.mxu0
        %v586 = vadd.f32 %v405, %v585
        %v587 = vpop.f32.mrf.mxu0
        %588 = vmatprep.mubr.bf16.mxu0 0
        %589 = vmatmul.mubr.bf16.gmra.mxu0 %v495
        %v590 = vpop.f32.mrf.mxu0
        %v591 = vadd.f32 %v405, %v590
        %v592 = vpop.f32.mrf.mxu0
        %v593 = vpop.f32.mrf.mxu0
        %v594 = vadd.f32 %v405, %v593
        %v595 = vpop.f32.mrf.mxu0
        %596 = vmatprep.mubr.bf16.mxu0 0
        %597 = vmatmul.mubr.bf16.gmra.mxu0 %v498
        %v598 = vpop.f32.mrf.mxu0
        %v599 = vadd.f32 %v405, %v598
        %v600 = vpop.f32.mrf.mxu0
        %v601 = vpop.f32.mrf.mxu0
        %v602 = vadd.f32 %v405, %v601
        %v603 = vpop.f32.mrf.mxu0
        %604 = vmatprep.mubr.bf16.mxu0 0
        %605 = vmatmul.mubr.bf16.gmra.mxu0 %v501
        %v606 = vpop.f32.mrf.mxu0
        %v607 = vadd.f32 %v405, %v606
        %v608 = vpop.f32.mrf.mxu0
        %v609 = vpop.f32.mrf.mxu0
        %v610 = vadd.f32 %v405, %v609
        %v611 = vpop.f32.mrf.mxu0
        %612 = vmatprep.mubr.bf16.mxu0 0
        %613 = vmatmul.mubr.bf16.gmra.mxu0 %v504
        %v614 = vpop.f32.mrf.mxu0
        %v615 = vadd.f32 %v405, %v614
        %v616 = vpop.f32.mrf.mxu0
        %v617 = vpop.f32.mrf.mxu0
        %v618 = vadd.f32 %v405, %v617
        %v619 = vpop.f32.mrf.mxu0
        %620 = vmatprep.mubr.bf16.mxu0 0
        %621 = vmatmul.mubr.bf16.gmra.mxu0 %v507
        %v622 = vpop.f32.mrf.mxu0
        %v623 = vadd.f32 %v405, %v622
        %v624 = vpop.f32.mrf.mxu0
        %v625 = vpop.f32.mrf.mxu0
        %v626 = vadd.f32 %v405, %v625
        %v627 = vpop.f32.mrf.mxu0
        %628 = vmatprep.mubr.bf16.mxu0 0
        %629 = vmatmul.mubr.bf16.gmra.mxu0 %v510
        %v630 = vpop.f32.mrf.mxu0
        %v631 = vadd.f32 %v405, %v630
        %v632 = vpop.f32.mrf.mxu0
        %v633 = vpop.f32.mrf.mxu0
        %v634 = vadd.f32 %v405, %v633
        %v635 = vpop.f32.mrf.mxu0
        %636 = vmatprep.mubr.bf16.mxu0 0
        %637 = vmatmul.mubr.bf16.gmra.mxu0 %v513
        %v638 = vpop.f32.mrf.mxu0
        %v639 = vadd.f32 %v405, %v638
        %v640 = vpop.f32.mrf.mxu0
        %v641 = vpop.f32.mrf.mxu0
        %v642 = vadd.f32 %v405, %v641
        %v643 = vpop.f32.mrf.mxu0
        %644 = vmatprep.mubr.bf16.mxu0 0
        %645 = vmatmul.mubr.bf16.gmra.mxu0 %v516
        %v646 = vpop.f32.mrf.mxu0
        %v647 = vadd.f32 %v405, %v646
        %v648 = vpop.f32.mrf.mxu0
        %v649 = vpop.f32.mrf.mxu0
        %v650 = vadd.f32 %v405, %v649
        %v651 = vpop.f32.mrf.mxu0
        %652 = vmatprep.mubr.bf16.mxu0 0
        %653 = vmatmul.mubr.bf16.gmra.mxu0 %v519
        %v654 = vpop.f32.mrf.mxu0
        %v655 = vadd.f32 %v405, %v654
        %v656 = vpop.f32.mrf.mxu0
        %v657 = vpop.f32.mrf.mxu0
        %v658 = vadd.f32 %v405, %v657
        %v659 = vpop.f32.mrf.mxu0
        %660 = vmatprep.mubr.bf16.mxu0 0
        %661 = vmatmul.mubr.bf16.gmra.mxu0 %v522
        %v662 = vpop.f32.mrf.mxu0
        %v663 = vadd.f32 %v405, %v662
        %v664 = vpop.f32.mrf.mxu0
        %v665 = vpop.f32.mrf.mxu0
        %v666 = vadd.f32 %v405, %v665
        %v667 = vpop.f32.mrf.mxu0
        %668 = vmatprep.mubr.bf16.mxu0 0
        %669 = vmatmul.mubr.bf16.gmra.mxu0 %v525
        %v670 = vpop.f32.mrf.mxu0
        %v671 = vadd.f32 %v405, %v670
        %v672 = vpop.f32.mrf.mxu0
        %v673 = vpop.f32.mrf.mxu0
        %v674 = vadd.f32 %v405, %v673
        %v675 = vpop.f32.mrf.mxu0
        %676 = vmatprep.mubr.bf16.mxu0 0
        %677 = vmatmul.mubr.bf16.gmra.mxu0 %v528
        %v678 = vpop.f32.mrf.mxu0
        %v679 = vadd.f32 %v405, %v678
        %v680 = vpop.f32.mrf.mxu0
        %v681 = vpop.f32.mrf.mxu0
        %v682 = vadd.f32 %v405, %v681
        %v683 = vpop.f32.mrf.mxu0
        %684 = vmatprep.mubr.bf16.mxu0 0
        %685 = vmatmul.mubr.bf16.gmra.mxu0 %v531
        %v686 = vpop.f32.mrf.mxu0
        %v687 = vadd.f32 %v405, %v686
        %v688 = vpop.f32.mrf.mxu0
        %v689 = vpop.f32.mrf.mxu0
        %v690 = vadd.f32 %v405, %v689
        %v691 = vpop.f32.mrf.mxu0
        %692 = vmatprep.mubr.bf16.mxu0 0
        %693 = vmatmul.mubr.bf16.gmra.mxu0 %v534
        %v694 = vpop.f32.mrf.mxu0
        %v695 = vadd.f32 %v405, %v694
        %v696 = vpop.f32.mrf.mxu0
        %v697 = vpop.f32.mrf.mxu0
        %v698 = vadd.f32 %v405, %v697
        %v699 = vpop.f32.mrf.mxu0
        %700 = vdwg.mxu0
        %v701 = vmax.f32 %v575, 0.0
        %v702 = vmax.f32 %v578, 0.0
        %v703 = vmax.f32 %v583, 0.0
        %v704 = vmax.f32 %v586, 0.0
        %v705 = vmax.f32 %v591, 0.0
        %v706 = vmax.f32 %v594, 0.0
        %v707 = vmax.f32 %v599, 0.0
        %v708 = vmax.f32 %v602, 0.0
        %v709 = vmax.f32 %v607, 0.0
        %v710 = vmax.f32 %v610, 0.0
        %v711 = vmax.f32 %v615, 0.0
        %v712 = vmax.f32 %v618, 0.0
        %v713 = vmax.f32 %v623, 0.0
        %v714 = vmax.f32 %v626, 0.0
        %v715 = vmax.f32 %v631, 0.0
        %v716 = vmax.f32 %v634, 0.0
        %v717 = vmax.f32 %v639, 0.0
        %v718 = vmax.f32 %v642, 0.0
        %v719 = vmax.f32 %v647, 0.0
        %v720 = vmax.f32 %v650, 0.0
        %v721 = vmax.f32 %v655, 0.0
        %v722 = vmax.f32 %v658, 0.0
        %v723 = vmax.f32 %v663, 0.0
        %v724 = vmax.f32 %v666, 0.0
        %v725 = vmax.f32 %v671, 0.0
        %v726 = vmax.f32 %v674, 0.0
        %v727 = vmax.f32 %v679, 0.0
        %v728 = vmax.f32 %v682, 0.0
        %v729 = vmax.f32 %v687, 0.0
        %v730 = vmax.f32 %v690, 0.0
        %v731 = vmax.f32 %v695, 0.0
        %v732 = vmax.f32 %v698, 0.0
        %v733 = vpack.c.bf16 %v702, %v701
        %v734 = vpack.c.bf16 %v704, %v703
        %v735 = vpack.c.bf16 %v706, %v705
        %v736 = vpack.c.bf16 %v708, %v707
        %v737 = vpack.c.bf16 %v710, %v709
        %v738 = vpack.c.bf16 %v712, %v711
        %v739 = vpack.c.bf16 %v714, %v713
        %v740 = vpack.c.bf16 %v716, %v715
        %v741 = vpack.c.bf16 %v718, %v717
        %v742 = vpack.c.bf16 %v720, %v719
        %v743 = vpack.c.bf16 %v722, %v721
        %v744 = vpack.c.bf16 %v724, %v723
        %v745 = vpack.c.bf16 %v726, %v725
        %v746 = vpack.c.bf16 %v728, %v727
        %v747 = vpack.c.bf16 %v730, %v729
        %v748 = vpack.c.bf16 %v732, %v731
        %v749 = vld [vmem:[%s2] sm:$0xf]
        %v750 = vld [vmem:[%s2 + $0x4] sm:$0xf]
        %v751 = vld [vmem:[%s2 + $0x8] sm:$0xf]
        %v752 = vld [vmem:[%s2 + $0xc] sm:$0xf]
        %v753 = vld [vmem:[%s2 + $0x10] sm:$0xf]
        %v754 = vld [vmem:[%s2 + $0x14] sm:$0xf]
        %v755 = vld [vmem:[%s2 + $0x18] sm:$0xf]
        %v756 = vld [vmem:[%s2 + $0x1c] sm:$0xf]
        %v757 = vld [vmem:[%s2 + $0x20] sm:$0xf]
        %v758 = vld [vmem:[%s2 + $0x24] sm:$0xf]
        %v759 = vld [vmem:[%s2 + $0x28] sm:$0xf]
        %v760 = vld [vmem:[%s2 + $0x2c] sm:$0xf]
        %v761 = vld [vmem:[%s2 + $0x30] sm:$0xf]
        %v762 = vld [vmem:[%s2 + $0x34] sm:$0xf]
        %v763 = vld [vmem:[%s2 + $0x38] sm:$0xf]
        %v764 = vld [vmem:[%s2 + $0x3c] sm:$0xf]
        %s765 = scalar_lea.vmem %s3, 1
        %v766 = vld [vmem:[%s765] sm:$0x1]
        %v768 = vlaneseq
        %v769 = vshrl.u32 %v768, 7
        %v770 = vsub.s32 0, %v769
        %v771 = vrot.slane %v766, %v770
        %v789 = vunpack.c.l.b16 %v749
        %v790 = vunpack.c.l.b16 %v750
        %v791 = vunpack.c.l.b16 %v751
        %v792 = vunpack.c.l.b16 %v752
        %v793 = vunpack.c.l.b16 %v753
        %v794 = vunpack.c.l.b16 %v754
        %v795 = vunpack.c.l.b16 %v755
        %v796 = vunpack.c.l.b16 %v756
        %v797 = vunpack.c.l.b16 %v757
        %v798 = vunpack.c.l.b16 %v758
        %v799 = vunpack.c.l.b16 %v759
        %v800 = vunpack.c.l.b16 %v760
        %v801 = vunpack.c.l.b16 %v761
        %v802 = vunpack.c.l.b16 %v762
        %v803 = vunpack.c.l.b16 %v763
        %v804 = vunpack.c.l.b16 %v764
        %v805 = vpack.c.b16 %v790, %v789
        %v806 = vpack.c.b16 %v792, %v791
        %v807 = vpack.c.b16 %v794, %v793
        %v808 = vpack.c.b16 %v796, %v795
        %v809 = vpack.c.b16 %v798, %v797
        %v810 = vpack.c.b16 %v800, %v799
        %v811 = vpack.c.b16 %v802, %v801
        %v812 = vpack.c.b16 %v804, %v803
        %821 = vmatprep.subr.bf16.mxu0 0
        %822 = vmatpush1.bf16.msra.mxu0 %v812
        %823 = vmatprep.subr.bf16.mxu0 0
        %824 = vmatpush1.bf16.msra.mxu0 %v811
        %825 = vmatprep.subr.bf16.mxu0 0
        %826 = vmatpush1.bf16.msra.mxu0 %v810
        %827 = vmatprep.subr.bf16.mxu0 0
        %828 = vmatpush1.bf16.msra.mxu0 %v809
        %829 = vmatprep.subr.bf16.mxu0 0
        %830 = vmatpush1.bf16.msra.mxu0 %v808
        %831 = vmatprep.subr.bf16.mxu0 0
        %832 = vmatpush1.bf16.msra.mxu0 %v807
        %833 = vmatprep.subr.bf16.mxu0 0
        %834 = vmatpush1.bf16.msra.mxu0 %v806
        %835 = vmatprep.subr.bf16.mxu0 0
        %836 = vmatpush1.bf16.msra.mxu0 %v805
        %837 = vmatprep.subr.bf16.mxu0 0
        %838 = vmatpush2.bf16.msra.mxu0 0
        %839 = vmatprep.subr.bf16.mxu0 0
        %840 = vmatpush2.bf16.msra.mxu0 0
        %841 = vmatprep.subr.bf16.mxu0 0
        %842 = vmatpush2.bf16.msra.mxu0 0
        %843 = vmatprep.subr.bf16.mxu0 0
        %844 = vmatpush2.bf16.msra.mxu0 0
        %845 = vmatprep.subr.bf16.mxu0 0
        %846 = vmatpush2.bf16.msra.mxu0 0
        %847 = vmatprep.subr.bf16.mxu0 0
        %848 = vmatpush2.bf16.msra.mxu0 0
        %849 = vmatprep.subr.bf16.mxu0 0
        %850 = vmatpush2.bf16.msra.mxu0 0
        %851 = vmatprep.subr.bf16.mxu0 0
        %852 = vmatpush2.bf16.msra.mxu0 0
        %853 = vmatprep.mubr.bf16.mxu0 0
        %854 = vmatmul.mubr.bf16.gmra.mxu0 %v733
        %v855 = vpop.f32.mrf.mxu0
        %v856 = vadd.f32 %v771, %v855
        %v857 = vpop.f32.mrf.mxu0
        %v858 = vpop.f32.mrf.mxu0
        %v859 = vadd.f32 %v771, %v858
        %v860 = vpop.f32.mrf.mxu0
        %861 = vmatprep.mubr.bf16.mxu0 0
        %862 = vmatmul.mubr.bf16.gmra.mxu0 %v734
        %v863 = vpop.f32.mrf.mxu0
        %v864 = vadd.f32 %v771, %v863
        %v865 = vpop.f32.mrf.mxu0
        %v866 = vpop.f32.mrf.mxu0
        %v867 = vadd.f32 %v771, %v866
        %v868 = vpop.f32.mrf.mxu0
        %869 = vmatprep.mubr.bf16.mxu0 0
        %870 = vmatmul.mubr.bf16.gmra.mxu0 %v735
        %v871 = vpop.f32.mrf.mxu0
        %v872 = vadd.f32 %v771, %v871
        %v873 = vpop.f32.mrf.mxu0
        %v874 = vpop.f32.mrf.mxu0
        %v875 = vadd.f32 %v771, %v874
        %v876 = vpop.f32.mrf.mxu0
        %877 = vmatprep.mubr.bf16.mxu0 0
        %878 = vmatmul.mubr.bf16.gmra.mxu0 %v736
        %v879 = vpop.f32.mrf.mxu0
        %v880 = vadd.f32 %v771, %v879
        %v881 = vpop.f32.mrf.mxu0
        %v882 = vpop.f32.mrf.mxu0
        %v883 = vadd.f32 %v771, %v882
        %v884 = vpop.f32.mrf.mxu0
        %885 = vmatprep.mubr.bf16.mxu0 0
        %886 = vmatmul.mubr.bf16.gmra.mxu0 %v737
        %v887 = vpop.f32.mrf.mxu0
        %v888 = vadd.f32 %v771, %v887
        %v889 = vpop.f32.mrf.mxu0
        %v890 = vpop.f32.mrf.mxu0
        %v891 = vadd.f32 %v771, %v890
        %v892 = vpop.f32.mrf.mxu0
        %893 = vmatprep.mubr.bf16.mxu0 0
        %894 = vmatmul.mubr.bf16.gmra.mxu0 %v738
        %v895 = vpop.f32.mrf.mxu0
        %v896 = vadd.f32 %v771, %v895
        %v897 = vpop.f32.mrf.mxu0
        %v898 = vpop.f32.mrf.mxu0
        %v899 = vadd.f32 %v771, %v898
        %v900 = vpop.f32.mrf.mxu0
        %901 = vmatprep.mubr.bf16.mxu0 0
        %902 = vmatmul.mubr.bf16.gmra.mxu0 %v739
        %v903 = vpop.f32.mrf.mxu0
        %v904 = vadd.f32 %v771, %v903
        %v905 = vpop.f32.mrf.mxu0
        %v906 = vpop.f32.mrf.mxu0
        %v907 = vadd.f32 %v771, %v906
        %v908 = vpop.f32.mrf.mxu0
        %909 = vmatprep.mubr.bf16.mxu0 0
        %910 = vmatmul.mubr.bf16.gmra.mxu0 %v740
        %v911 = vpop.f32.mrf.mxu0
        %v912 = vadd.f32 %v771, %v911
        %v913 = vpop.f32.mrf.mxu0
        %v914 = vpop.f32.mrf.mxu0
        %v915 = vadd.f32 %v771, %v914
        %v916 = vpop.f32.mrf.mxu0
        %917 = vmatprep.mubr.bf16.mxu0 0
        %918 = vmatmul.mubr.bf16.gmra.mxu0 %v741
        %v919 = vpop.f32.mrf.mxu0
        %v920 = vadd.f32 %v771, %v919
        %v921 = vpop.f32.mrf.mxu0
        %v922 = vpop.f32.mrf.mxu0
        %v923 = vadd.f32 %v771, %v922
        %v924 = vpop.f32.mrf.mxu0
        %925 = vmatprep.mubr.bf16.mxu0 0
        %926 = vmatmul.mubr.bf16.gmra.mxu0 %v742
        %v927 = vpop.f32.mrf.mxu0
        %v928 = vadd.f32 %v771, %v927
        %v929 = vpop.f32.mrf.mxu0
        %v930 = vpop.f32.mrf.mxu0
        %v931 = vadd.f32 %v771, %v930
        %v932 = vpop.f32.mrf.mxu0
        %933 = vmatprep.mubr.bf16.mxu0 0
        %934 = vmatmul.mubr.bf16.gmra.mxu0 %v743
        %v935 = vpop.f32.mrf.mxu0
        %v936 = vadd.f32 %v771, %v935
        %v937 = vpop.f32.mrf.mxu0
        %v938 = vpop.f32.mrf.mxu0
        %v939 = vadd.f32 %v771, %v938
        %v940 = vpop.f32.mrf.mxu0
        %941 = vmatprep.mubr.bf16.mxu0 0
        %942 = vmatmul.mubr.bf16.gmra.mxu0 %v744
        %v943 = vpop.f32.mrf.mxu0
        %v944 = vadd.f32 %v771, %v943
        %v945 = vpop.f32.mrf.mxu0
        %v946 = vpop.f32.mrf.mxu0
        %v947 = vadd.f32 %v771, %v946
        %v948 = vpop.f32.mrf.mxu0
        %949 = vmatprep.mubr.bf16.mxu0 0
        %950 = vmatmul.mubr.bf16.gmra.mxu0 %v745
        %v951 = vpop.f32.mrf.mxu0
        %v952 = vadd.f32 %v771, %v951
        %v953 = vpop.f32.mrf.mxu0
        %v954 = vpop.f32.mrf.mxu0
        %v955 = vadd.f32 %v771, %v954
        %v956 = vpop.f32.mrf.mxu0
        %957 = vmatprep.mubr.bf16.mxu0 0
        %958 = vmatmul.mubr.bf16.gmra.mxu0 %v746
        %v959 = vpop.f32.mrf.mxu0
        %v960 = vadd.f32 %v771, %v959
        %v961 = vpop.f32.mrf.mxu0
        %v962 = vpop.f32.mrf.mxu0
        %v963 = vadd.f32 %v771, %v962
        %v964 = vpop.f32.mrf.mxu0
        %965 = vmatprep.mubr.bf16.mxu0 0
        %966 = vmatmul.mubr.bf16.gmra.mxu0 %v747
        %v967 = vpop.f32.mrf.mxu0
        %v968 = vadd.f32 %v771, %v967
        %v969 = vpop.f32.mrf.mxu0
        %v970 = vpop.f32.mrf.mxu0
        %v971 = vadd.f32 %v771, %v970
        %v972 = vpop.f32.mrf.mxu0
        %973 = vmatprep.mubr.bf16.mxu0 0
        %974 = vmatmul.mubr.bf16.gmra.mxu0 %v748
        %v975 = vpop.f32.mrf.mxu0
        %v976 = vadd.f32 %v771, %v975
        %v977 = vpop.f32.mrf.mxu0
        %v978 = vpop.f32.mrf.mxu0
        %v979 = vadd.f32 %v771, %v978
        %v980 = vpop.f32.mrf.mxu0
        %981 = vdwg.mxu0
        %v982 = vmax.f32 %v856, 0.0
        %v983 = vmax.f32 %v859, 0.0
        %v984 = vmax.f32 %v864, 0.0
        %v985 = vmax.f32 %v867, 0.0
        %v986 = vmax.f32 %v872, 0.0
        %v987 = vmax.f32 %v875, 0.0
        %v988 = vmax.f32 %v880, 0.0
        %v989 = vmax.f32 %v883, 0.0
        %v990 = vmax.f32 %v888, 0.0
        %v991 = vmax.f32 %v891, 0.0
        %v992 = vmax.f32 %v896, 0.0
        %v993 = vmax.f32 %v899, 0.0
        %v994 = vmax.f32 %v904, 0.0
        %v995 = vmax.f32 %v907, 0.0
        %v996 = vmax.f32 %v912, 0.0
        %v997 = vmax.f32 %v915, 0.0
        %v998 = vmax.f32 %v920, 0.0
        %v999 = vmax.f32 %v923, 0.0
        %v1000 = vmax.f32 %v928, 0.0
        %v1001 = vmax.f32 %v931, 0.0
        %v1002 = vmax.f32 %v936, 0.0
        %v1003 = vmax.f32 %v939, 0.0
        %v1004 = vmax.f32 %v944, 0.0
        %v1005 = vmax.f32 %v947, 0.0
        %v1006 = vmax.f32 %v952, 0.0
        %v1007 = vmax.f32 %v955, 0.0
        %v1008 = vmax.f32 %v960, 0.0
        %v1009 = vmax.f32 %v963, 0.0
        %v1010 = vmax.f32 %v968, 0.0
        %v1011 = vmax.f32 %v971, 0.0
        %v1012 = vmax.f32 %v976, 0.0
        %v1013 = vmax.f32 %v979, 0.0
        %v1014 = vmax.f32 %v982, %v984
        %v1015 = vmax.f32 %v983, %v985
        %v1016 = vmax.f32 %v1014, %v986
        %v1017 = vmax.f32 %v1015, %v987
        %v1018 = vmax.f32 %v1016, %v988
        %v1019 = vmax.f32 %v1017, %v989
        %v1020 = vmax.f32 %v1018, %v990
        %v1021 = vmax.f32 %v1019, %v991
        %v1022 = vmax.f32 %v1020, %v992
        %v1023 = vmax.f32 %v1021, %v993
        %v1024 = vmax.f32 %v1022, %v994
        %v1025 = vmax.f32 %v1023, %v995
        %v1026 = vmax.f32 %v1024, %v996
        %v1027 = vmax.f32 %v1025, %v997
        %v1028 = vmax.f32 %v1026, %v998
        %v1029 = vmax.f32 %v1027, %v999
        %v1030 = vmax.f32 %v1028, %v1000
        %v1031 = vmax.f32 %v1029, %v1001
        %v1032 = vmax.f32 %v1030, %v1002
        %v1033 = vmax.f32 %v1031, %v1003
        %v1034 = vmax.f32 %v1032, %v1004
        %v1035 = vmax.f32 %v1033, %v1005
        %v1036 = vmax.f32 %v1034, %v1006
        %v1037 = vmax.f32 %v1035, %v1007
        %v1038 = vmax.f32 %v1036, %v1008
        %v1039 = vmax.f32 %v1037, %v1009
        %v1040 = vmax.f32 %v1038, %v1010
        %v1041 = vmax.f32 %v1039, %v1011
        %v1042 = vmax.f32 %v1040, %v1012
        %v1043 = vmax.f32 %v1041, %v1013
        %1044 = vst [vmem:[%s363] sm:$0xff] %v1042
        %1045 = vst [vmem:[%s363 + $0x8] sm:$0xff] %v1043
        %s1046 = sand.u32 %s115, 1
        %s1047 = scalar_lea.sflag [#allocation4], %s1046
        %s1048 = sand.u32 %s115, 1
        %s1049 = smul.addr %s1048, 16
        %s1050 = scalar_lea.vmem [#allocation3], %s1049
        // Predicated region
        $region78: #{tpu_custom_call.1} parent=72 // pred_check
          %p1051 = pneg %p125
        $region79: #{tpu_custom_call.1} parent=72 // pred_check_branch
          %1053 = sbr.rel (%p1051) target = $region81
        $region80: #{tpu_custom_call.1} parent=72 // pred_region
          %s1054 = smul.u32 2, %s18
          %s1056 = ssub.s32 256, 256
          %1057 = vsyncadd %s1047, %s1056
          %s1058 = smul.addr %s1054, 128
          %s1059 = scalar_lea.hbm %s4, %s1058
          %s1060 = sshll.u32 %s1050, 4
          %s1061 = int_to_ptr.vmem [resolvable:$true] %s1060
          %1066 = dma.vmem_to_hbm [thread:$0]  %s1061, 256, %s1059, %s1047, 128, 128, 8
        $region81: #{tpu_custom_call.1} parent=72 // pred_fallthru
          _
      $region73: #{tpu_custom_call.1} parent=5 // pred_fallthru
        _
      %p1067 = scmp.le.s32.totalorder 2, %s13
      // Predicated region
      $region82: #{tpu_custom_call.1} parent=5 // pred_check
        %p1068 = pneg %p1067
      $region83: #{tpu_custom_call.1} parent=5 // pred_check_branch
        %1070 = sbr.rel (%p1068) target = $region85
      $region84: #{tpu_custom_call.1} parent=5 // pred_region
        %s1071 = ssub.s32 %s13, 2
        // Predicated region
        $region86: #{tpu_custom_call.1} parent=84 // pred_check
          %p1072 = pneg %p131
        $region87: #{tpu_custom_call.1} parent=84 // pred_check_branch
          %1074 = sbr.rel (%p1072) target = $region89
        $region88: #{tpu_custom_call.1} parent=84 // pred_region
          %s1075 = sand.u32 %s116, 1
          %s1076 = scalar_lea.sflag [#allocation4], %s1075
          %s1077 = sand.u32 %s116, 1
          %s1078 = smul.addr %s1077, 16
          %s1079 = scalar_lea.vmem [#allocation3], %s1078
          %1080 = dma.done %s1076, 256
        $region89: #{tpu_custom_call.1} parent=84 // pred_fallthru
          _
      $region85: #{tpu_custom_call.1} parent=5 // pred_fallthru
        _
    $region6: #{tpu_custom_call.1} parent=1 // loop_footer
      %s17 = sadd.s32 1, %s13
    $region7: #{tpu_custom_call.1} parent=1 // loop_footer_branch
      %12 = sbr.rel target = $region3
    $region8: #{tpu_custom_call.1} parent=1 // loop_exit
      _
    %1081 = vsyncpa [#allocation4], 1
    %s1082 = scalar_lea.sflag [#allocation4], 1
    %1083 = vsyncpa %s1082, 1

</llo_original>
